<compile_context>
chip_gen: v7x
topology: tpu7x:2x2x1
jax: 0.10.0
libtpu: 0.0.40
codegen_flags: <defaults>
</compile_context>

<pallas_src>
import functools

import jax
import jax.numpy as jnp
from jax.experimental import pallas as pl
from jax.experimental.pallas import tpu as pltpu


def _round_up(x, m):
    return ((x + m - 1) // m) * m


@functools.lru_cache(maxsize=None)
def _vmem_limit():
    """Generation-aware scoped-VMEM budget: 3/4 of physical, >= 32 MiB."""
    try:
        cap = int(pltpu.get_tpu_info().vmem_capacity_bytes)
    except Exception:  # attribute / query not available -> conservative default
        cap = 64 * 1024 * 1024
    return max(32 * 1024 * 1024, (cap * 3) // 4)


@functools.lru_cache(maxsize=None)
def _roll_matches_numpy():
    """One-time probe: does pltpu.roll (dynamic shift) match np.roll?"""
    def probe(x_ref, o_ref):
        s = pl.program_id(0) + 1           # force the dynamic-rotate path
        o_ref[...] = pltpu.roll(x_ref[...], s, axis=1)

    x = jnp.arange(8 * 128, dtype=jnp.float32).reshape(8, 128)
    y = pl.pallas_call(
        probe,
        out_shape=jax.ShapeDtypeStruct((8, 128), jnp.float32),
        grid=(1,),
        in_specs=[pl.BlockSpec((8, 128), lambda i: (0, 0))],
        out_specs=pl.BlockSpec((8, 128), lambda i: (0, 0)),
    )(x)
    return bool(jnp.allclose(y, jnp.roll(x, 1, axis=1)))


# ----------------------------------------------------------------------------
# Pallas kernel 1: per-(document, pair-tile) context vectors.
#   ha = onehot_h @ entity_att[h];  ta = onehot_t @ entity_att[h]  (exact
#   MXU gather of the unique per-entity attention rows, resident in VMEM)
#   ht = mean_h(ha * ta);  ht = ht / (sum_l ht + 1e-5);  rs = ht @ seq
# ----------------------------------------------------------------------------
def _rs_kernel(oh_h_ref, oh_t_ref, eatt_ref, seq_ref, rs_ref, *, heads):
    # oh_*: (tile_r, ne_pad) bf16 one-hot; eatt: (heads, ne_pad, L) bf16
    # seq: (L, H) bf16; rs: (tile_r, H) bf16
    tile_r = oh_h_ref.shape[0]
    L = seq_ref.shape[0]
    oh_h = oh_h_ref[...]
    oh_t = oh_t_ref[...]

    ht = jnp.zeros((tile_r, L), jnp.float32)
    for h in range(heads):                       # small static unroll (<=12)
        ea = eatt_ref[h]                         # (ne_pad, L) bf16, resident
        ha = jnp.dot(oh_h, ea, preferred_element_type=jnp.float32)
        ta = jnp.dot(oh_t, ea, preferred_element_type=jnp.float32)
        ht = ht + ha * ta
    ht = ht * (1.0 / heads)

    denom = jnp.sum(ht, axis=-1, keepdims=True) + 1e-5
    ht = ht * pl.reciprocal(denom, approx=True)  # EUP slot, frees VALU
    rs_ref[...] = jnp.dot(ht.astype(jnp.bfloat16), seq_ref[...],
                          preferred_element_type=jnp.float32
                          ).astype(rs_ref.dtype)


def compute_rs(oh_h, oh_t, entity_atts, seq, *, tile_r):
    # oh_h / oh_t: (n, r_pad, ne_pad) bf16; entity_atts: (n, heads, ne_pad, L)
    # bf16; seq: (n, L, H) bf16.  Returns (n, r_pad, H) bf16.
    n, r_pad, ne_pad = oh_h.shape
    _, heads, _, L = entity_atts.shape
    H = seq.shape[-1]
    assert r_pad % tile_r == 0
    grid = (n, r_pad // tile_r)

    cost = pl.CostEstimate(
        flops=int(2 * n * r_pad * (2 * heads * ne_pad * L + L * H)
                  + 2 * n * r_pad * heads * L),
        transcendentals=int(n * r_pad),
        bytes_accessed=int(2 * n * (heads * ne_pad * L + L * H + r_pad * H
                                    + 2 * r_pad * ne_pad)),
    )

    return pl.pallas_call(
        functools.partial(_rs_kernel, heads=heads),
        out_shape=jax.ShapeDtypeStruct((n, r_pad, H), jnp.bfloat16),
        grid=grid,
        in_specs=[
            pl.BlockSpec((None, tile_r, ne_pad), lambda i, r: (i, r, 0)),
            pl.BlockSpec((None, tile_r, ne_pad), lambda i, r: (i, r, 0)),
            # unique entity attention & seq stay VMEM-resident across r tiles
            pl.BlockSpec((None, heads, ne_pad, L), lambda i, r: (i, 0, 0, 0)),
            pl.BlockSpec((None, L, H), lambda i, r: (i, 0, 0)),
        ],
        out_specs=pl.BlockSpec((None, tile_r, H), lambda i, r: (i, r, 0)),
        compiler_params=pltpu.CompilerParams(
            dimension_semantics=("parallel", "parallel"),
            vmem_limit_bytes=_vmem_limit(),
        ),
        cost_estimate=cost,
    )(oh_h, oh_t, entity_atts, seq)


# ----------------------------------------------------------------------------
# Pallas kernel 2: extractors + grouped-block bilinear + classifier.
#   hs_x = tanh(hs @ Wh_h + rs @ Wh_r + bh); ts_x analogous
#   logits[p, c] = sum_{g,i,j} hs_x[p, gB+i] ts_x[p, gB+j] Wb[gBB+iB+j, c] + bb
# realised as a fori_loop over the within-group shift k:
#   logits += (hs_x * shift_k(ts_x)) @ Wperm[k]
# where shift_k(ts_x)[p, gB+i] = ts_x[p, gB + (i+k) mod B] is built from two
# lane rolls (XLU) + one select, and Wperm (bf16, resident) is the classifier
# weight row-permuted once on the host.  No (P, H*B) intermediate, no
# unaligned slice copies, no 64-way static unroll.
# ----------------------------------------------------------------------------
def _classifier_kernel(hs_ref, ts_ref, rs_ref, whh_ref, whr_ref, bh_ref,
                       wth_ref, wtr_ref, bt_ref, wperm_ref, bb_ref, out_ref,
                       *, block_size, roll_like_numpy):
    B = block_size
    rs = rs_ref[...]                                      # bf16
    hs_x = jnp.tanh(
        jnp.dot(hs_ref[...], whh_ref[...], preferred_element_type=jnp.float32)
        + jnp.dot(rs, whr_ref[...], preferred_element_type=jnp.float32)
        + bh_ref[...])
    ts_x = jnp.tanh(
        jnp.dot(ts_ref[...], wth_ref[...], preferred_element_type=jnp.float32)
        + jnp.dot(rs, wtr_ref[...], preferred_element_type=jnp.float32)
        + bt_ref[...])

    tp, H = hs_x.shape
    lane_in_group = jax.lax.broadcasted_iota(jnp.int32, (tp, H), 1) % B
    out_ref[...] = jnp.broadcast_to(bb_ref[...], out_ref.shape)

    def body(k, carry):
        # want: in-branch  -> ts_x[:, q + k]      (no within-group wrap)
        #       wrap-branch-> ts_x[:, q + k - B]  (wrapped within the group)
        if roll_like_numpy:      # roll(x, s)[q] = x[(q - s) mod H]
            s_in = (H - k) % H
            s_wrap = (B - k) % H
        else:                    # roll(x, s)[q] = x[(q + s) mod H]
            s_in = k
            s_wrap = (H - B + k) % H
        roll_in = pltpu.roll(ts_x, s_in, axis=1)
        roll_wrap = pltpu.roll(ts_x, s_wrap, axis=1)
        ts_shift = jnp.where(lane_in_group + k < B, roll_in, roll_wrap)
        prod = (hs_x * ts_shift).astype(jnp.bfloat16)
        out_ref[...] += jnp.dot(prod, wperm_ref[k],
                                preferred_element_type=jnp.float32)
        return carry

    jax.lax.fori_loop(0, B, body, 0, unroll=2)


def classify_pairs(hs, ts, rs, cparams, *, tile_p=128):
    P, H = hs.shape
    B = cparams["block_size"]
    num_labels = cparams["num_labels"]
    c_pad = cparams["bbp"].shape[-1]

    # guarantee >= 2 grid steps along the pair axis when possible (v7x 2 TCs)
    while tile_p > 8 and _round_up(P, tile_p) // tile_p < 2:
        tile_p //= 2
    p_pad = _round_up(max(P, tile_p), tile_p)

    def prep(x):
        x = x.astype(jnp.bfloat16)
        if p_pad != P:
            x = jnp.pad(x, ((0, p_pad - P), (0, 0)))
        return x

    hs, ts, rs = prep(hs), prep(ts), prep(rs)
    grid = (p_pad // tile_p,)
    feat_spec = pl.BlockSpec((tile_p, H), lambda p: (p, 0))
    wspec = pl.BlockSpec((H, H), lambda p: (0, 0))        # resident bf16 weights
    bspec = pl.BlockSpec((1, H), lambda p: (0, 0))

    cost = pl.CostEstimate(
        flops=int(2 * p_pad * (4 * H * H + B * H * c_pad) + 4 * B * p_pad * H),
        transcendentals=int(2 * p_pad * H),
        bytes_accessed=int(2 * (3 * p_pad * H + 4 * H * H + B * H * c_pad)
                           + 4 * (2 * H + c_pad + p_pad * c_pad)),
    )

    out = pl.pallas_call(
        functools.partial(_classifier_kernel, block_size=B,
                          roll_like_numpy=_roll_matches_numpy()),
        out_shape=jax.ShapeDtypeStruct((p_pad, c_pad), jnp.float32),
        grid=grid,
        in_specs=[
            feat_spec, feat_spec, feat_spec,
            wspec, wspec, bspec,
            wspec, wspec, bspec,
            pl.BlockSpec((B, H, c_pad), lambda p: (0, 0, 0)),   # resident bf16
            pl.BlockSpec((1, c_pad), lambda p: (0, 0)),
        ],
        out_specs=pl.BlockSpec((tile_p, c_pad), lambda p: (p, 0)),
        compiler_params=pltpu.CompilerParams(
            dimension_semantics=("parallel",),
            vmem_limit_bytes=_vmem_limit(),
        ),
        cost_estimate=cost,
    )(hs, ts, rs,
      cparams["whh"], cparams["whr"], cparams["bh"],
      cparams["wth"], cparams["wtr"], cparams["bt"],
      cparams["wperm"], cparams["bbp"])
    # padded pair rows and padded label lanes are sliced away here
    return out[:P, :num_labels]


# ----------------------------------------------------------------------------
# Plain-JAX glue: deterministic encoder stub (stands in for self.model)
# ----------------------------------------------------------------------------
def encoder_stub(params, input_ids, input_mask):
    x = params["emb"][input_ids]                         # (n, L, H)
    n, L, H = x.shape
    heads = params["num_heads"]
    dh = H // heads
    q = x @ params["wq"]
    k = x @ params["wk"]
    v = x @ params["wv"]

    def split(t):
        return t.reshape(n, L, heads, dh).transpose(0, 2, 1, 3)  # (n,heads,L,dh)

    qh, kh, vh = split(q), split(k), split(v)
    scores = jnp.einsum("nhld,nhmd->nhlm", qh, kh) / jnp.sqrt(float(dh))
    mask = (input_mask[:, None, None, :] == 0)
    scores = jnp.where(mask, -1e9, scores)
    attn = jax.nn.softmax(scores, axis=-1)               # (n, heads, L, L)
    ctx = jnp.einsum("nhlm,nhmd->nhld", attn, vh)
    seq = ctx.transpose(0, 2, 1, 3).reshape(n, L, H)     # (n, L, H)
    pooler = jnp.tanh(seq[:, 0] @ params["wp"])
    return seq, attn, pooler


# ----------------------------------------------------------------------------
# Plain-JAX glue: get_hrt entity bookkeeping (variable-length python
# structures).  Only the *unique* per-entity attention rows are kept (no
# per-pair replication); pair gathers happen inside the Pallas rs kernel via
# one-hot matmuls.
# ----------------------------------------------------------------------------
def build_pair_features(seq, attn, entity_pos, hts, offset=1):
    n, heads, L, _ = attn.shape
    H = seq.shape[-1]
    hs_list, ts_list, eatt_list, ne_list = [], [], [], []
    for i in range(n):
        embs, atts = [], []
        for e in entity_pos[i]:
            if len(e) > 1:
                e_embs, e_atts = [], []
                for (start, _end) in e:
                    if start + offset < L:
                        e_embs.append(seq[i, start + offset])
                        e_atts.append(attn[i, :, start + offset])
                if e_embs:
                    e_emb = jax.nn.logsumexp(jnp.stack(e_embs, 0), axis=0)
                    e_att = jnp.mean(jnp.stack(e_atts, 0), axis=0)
                else:
                    e_emb = jnp.zeros((H,), seq.dtype)
                    e_att = jnp.zeros((heads, L), attn.dtype)
            else:
                start, _end = e[0]
                if start + offset < L:
                    e_emb = seq[i, start + offset]
                    e_att = attn[i, :, start + offset]
                else:
                    e_emb = jnp.zeros((H,), seq.dtype)
                    e_att = jnp.zeros((heads, L), attn.dtype)
            embs.append(e_emb)
            atts.append(e_att)
        embs = jnp.stack(embs, 0)                        # (Ne, H)
        atts = jnp.stack(atts, 0)                        # (Ne, heads, L)
        ne_list.append(embs.shape[0])
        ht = jnp.asarray(hts[i], dtype=jnp.int32)
        hs_list.append(embs[ht[:, 0]])
        ts_list.append(embs[ht[:, 1]])
        eatt_list.append(atts)

    ne_pad = _round_up(max(ne_list), 8)
    entity_atts = jnp.stack(
        [jnp.pad(a, ((0, ne_pad - a.shape[0]), (0, 0), (0, 0)))
         for a in eatt_list], 0)                         # (n, ne_pad, heads, L)
    hs = jnp.concatenate(hs_list, 0)                     # (P, H)
    ts = jnp.concatenate(ts_list, 0)                     # (P, H)
    counts = [len(hts[i]) for i in range(n)]
    return hs, ts, entity_atts, counts, ne_pad


def build_pair_onehot(hts, r_pad, ne_pad):
    h_rows, t_rows = [], []
    for ht in hts:
        pad = r_pad - len(ht)
        h_rows.append([int(p[0]) for p in ht] + [0] * pad)
        t_rows.append([int(p[1]) for p in ht] + [0] * pad)
    h_idx = jnp.asarray(h_rows, jnp.int32)               # (n, r_pad)
    t_idx = jnp.asarray(t_rows, jnp.int32)
    oh_h = jax.nn.one_hot(h_idx, ne_pad, dtype=jnp.bfloat16)
    oh_t = jax.nn.one_hot(t_idx, ne_pad, dtype=jnp.bfloat16)
    return oh_h, oh_t


# ----------------------------------------------------------------------------
# Host-side weight prep: split extractor weights (bf16), pad classifier to
# 128 lanes, and build the per-shift row-permuted classifier weight
# Wperm[k, h, c] (bf16).
# ----------------------------------------------------------------------------
def prepare_classifier_params(params, hidden, block_size, num_labels,
                              lane_pad=128):
    H, B = hidden, block_size
    c_pad = _round_up(max(num_labels, lane_pad), lane_pad)
    wb_pad = jnp.zeros((H * B, c_pad), jnp.float32).at[:, :num_labels].set(
        params["wb"])
    bb_pad = jnp.zeros((1, c_pad), jnp.float32).at[:, :num_labels].set(
        params["bb"])

    h_idx = jnp.arange(H)
    g = h_idx // B
    i = h_idx % B
    slabs = []
    for k in range(B):
        j = (i + k) % B
        m = g * (B * B) + i * B + j          # original PyTorch row ordering
        slabs.append(wb_pad[m])              # (H, c_pad)
    wperm = jnp.stack(slabs, axis=0).astype(jnp.bfloat16)   # (B, H, c_pad)

    return {
        "whh": params["wh"][:H].astype(jnp.bfloat16),
        "whr": params["wh"][H:].astype(jnp.bfloat16),
        "bh": params["bh"],
        "wth": params["wt"][:H].astype(jnp.bfloat16),
        "wtr": params["wt"][H:].astype(jnp.bfloat16),
        "bt": params["bt"],
        "wperm": wperm, "bbp": bb_pad,
        "num_labels": num_labels, "block_size": B,
    }


# ----------------------------------------------------------------------------
# Full forward
# ----------------------------------------------------------------------------
def docre_forward(params, cparams, input_ids, input_mask, entity_pos, hts,
                  *, tile_p=128, tile_r=128):
    seq, attn, _pooler = encoder_stub(params, input_ids, input_mask)
    hs, ts, entity_atts, counts, ne_pad = build_pair_features(
        seq, attn, entity_pos, hts)
    n = len(counts)
    max_count = max(counts)
    tile_r = max(8, min(tile_r, _round_up(max_count, 8)))   # cap at 128 (v7x)
    r_pad = _round_up(max_count, tile_r)

    oh_h, oh_t = build_pair_onehot(hts, r_pad, ne_pad)
    # heads-leading layout + bf16 DMA for the (small, unique) attention rows
    eatt_hle = jnp.transpose(entity_atts, (0, 2, 1, 3)).astype(jnp.bfloat16)
    rs_full = compute_rs(oh_h, oh_t, eatt_hle, seq.astype(jnp.bfloat16),
                         tile_r=tile_r)                      # (n, r_pad, H) bf16
    rs = jnp.concatenate(
        [rs_full[i, :counts[i]] for i in range(n)], axis=0)  # (P, H) bf16
    return classify_pairs(hs, ts, rs, cparams, tile_p=tile_p)


# Plain-JAX reference (mirrors PyTorch semantics exactly, all f32).
def reference_forward(params, input_ids, input_mask, entity_pos, hts,
                      block_size):
    seq, attn, _ = encoder_stub(params, input_ids, input_mask)
    hs, ts, entity_atts, counts, _ = build_pair_features(
        seq, attn, entity_pos, hts)
    rs_list = []
    for i in range(len(counts)):
        ht_i = jnp.asarray(hts[i], jnp.int32)
        ha = entity_atts[i][ht_i[:, 0]]                  # (R, heads, L)
        ta = entity_atts[i][ht_i[:, 1]]
        htm = jnp.mean(ha * ta, axis=1)
        htm = htm / (jnp.sum(htm, axis=1, keepdims=True) + 1e-5)
        rs_list.append(htm @ seq[i])                     # 'ld,rl->rd'
    rs = jnp.concatenate(rs_list, 0)
    hs_fea = jnp.concatenate([hs, rs], axis=1)
    ts_fea = jnp.concatenate([ts, rs], axis=1)
    hs_x = jnp.tanh(hs_fea @ params["wh"] + params["bh"])
    ts_x = jnp.tanh(ts_fea @ params["wt"] + params["bt"])
    H = hs_x.shape[-1]
    B = block_size
    b1 = hs_x.reshape(-1, H // B, B)
    b2 = ts_x.reshape(-1, H // B, B)
    bl = (b1[:, :, :, None] * b2[:, :, None, :]).reshape(-1, H * B)
    return bl @ params["wb"] + params["bb"]


def init_params(key, vocab, H, heads, num_labels, block_size):
    ks = jax.random.split(key, 11)
    s = 0.05
    fea_dim = 2 * H
    return {
        "emb": jax.random.normal(ks[0], (vocab, H), jnp.float32) * 0.5,
        "wq": jax.random.normal(ks[1], (H, H), jnp.float32) * s,
        "wk": jax.random.normal(ks[2], (H, H), jnp.float32) * s,
        "wv": jax.random.normal(ks[3], (H, H), jnp.float32) * s,
        "wp": jax.random.normal(ks[4], (H, H), jnp.float32) * s,
        "wh": jax.random.normal(ks[5], (fea_dim, H), jnp.float32) * s,
        "bh": jax.random.normal(ks[6], (1, H), jnp.float32) * s,
        "wt": jax.random.normal(ks[7], (fea_dim, H), jnp.float32) * s,
        "bt": jax.random.normal(ks[8], (1, H), jnp.float32) * s,
        "wb": jax.random.normal(ks[9], (H * block_size, num_labels),
                                jnp.float32) * s,
        "bb": jax.random.normal(ks[10], (1, num_labels), jnp.float32) * s,
        "num_heads": heads,
    }


if __name__ == "__main__":
    # Small-but-lane-native toy shapes (H = L = 128 keeps every lane dim at
    # the native 128 width).  At production sizes (H=768, B=64, L=1024,
    # heads=12) the same code keeps all lane dims at multiples of 128 and the
    # classifier's resident bf16 weights at ~36 MiB (fits v7x's 64 MiB VMEM).
    n, L, H, heads = 2, 128, 128, 4
    vocab, num_labels, block_size = 64, 8, 16

    key = jax.random.PRNGKey(0)
    kp, kd = jax.random.split(key)
    params = init_params(kp, vocab, H, heads, num_labels, block_size)
    cparams = prepare_classifier_params(params, H, block_size, num_labels)

    input_ids = jax.random.randint(kd, (n, L), 0, vocab, dtype=jnp.int32)
    input_mask = jnp.ones((n, L), jnp.float32)

    # 3 entities per doc, 1-2 mentions each (start, end) pairs; bert offset=1.
    entity_pos = [
        [[(1, 2), (5, 6)], [(3, 4)], [(8, 9), (10, 11)]],
        [[(2, 3)], [(6, 7), (9, 10)], [(12, 13)]],
    ]
    # All ordered entity pairs excluding self (6 per document).
    hts = [
        [[0, 1], [0, 2], [1, 0], [1, 2], [2, 0], [2, 1]],
        [[0, 1], [0, 2], [1, 0], [1, 2], [2, 0], [2, 1]],
    ]

    logits = docre_forward(params, cparams, input_ids, input_mask,
                           entity_pos, hts)
    logits = jax.block_until_ready(logits)

    ref = reference_forward(params, input_ids, input_mask, entity_pos, hts,
                            block_size)
    assert logits.shape == (12, num_labels)
    max_err = float(jnp.max(jnp.abs(logits - ref)))
    assert max_err < 5e-2, f"mismatch vs reference, max abs err = {max_err}"
    print("KERNEL_OK")
</pallas_src>

<mosaic_0001>
module attributes {stable_mosaic.version = 11 : i64} {
  func.func @_rs_kernel(%arg0: i32, %arg1: i32, %arg2: memref<1x8x8xbf16, #tpu.memory_space<vmem>>, %arg3: memref<1x8x8xbf16, #tpu.memory_space<vmem>>, %arg4: memref<1x4x8x128xbf16, #tpu.memory_space<vmem>>, %arg5: memref<1x128x128xbf16, #tpu.memory_space<vmem>>, %arg6: memref<1x8x128xbf16, #tpu.memory_space<vmem>>) attributes {dimension_semantics = [#tpu.dimension_semantics<parallel>, #tpu.dimension_semantics<parallel>], iteration_bounds = array<i64: 2, 1>, scalar_prefetch = 0 : i64, scratch_operands = 0 : i64, tpu.core_type = #tpu.core_type<tc>, window_params = [{transform_indices = @transform_0, window_bounds = array<i64: 1, 8, 8>}, {transform_indices = @transform_1, window_bounds = array<i64: 1, 8, 8>}, {transform_indices = @transform_2, window_bounds = array<i64: 1, 4, 8, 128>}, {transform_indices = @transform_3, window_bounds = array<i64: 1, 128, 128>}, {transform_indices = @transform_4, window_bounds = array<i64: 1, 8, 128>}]} {
    %c0 = arith.constant 0 : index
    %c0_0 = arith.constant 0 : index
    %c0_1 = arith.constant 0 : index
    %0 = vector.load %arg2[%c0, %c0_0, %c0_1] : memref<1x8x8xbf16, #tpu.memory_space<vmem>>, vector<1x8x8xbf16>
    %1 = vector.shape_cast %0 : vector<1x8x8xbf16> to vector<8x8xbf16>
    %c0_2 = arith.constant 0 : index
    %c0_3 = arith.constant 0 : index
    %c0_4 = arith.constant 0 : index
    %2 = vector.load %arg3[%c0_2, %c0_3, %c0_4] : memref<1x8x8xbf16, #tpu.memory_space<vmem>>, vector<1x8x8xbf16>
    %3 = vector.shape_cast %2 : vector<1x8x8xbf16> to vector<8x8xbf16>
    %cst = arith.constant 0.000000e+00 : f32
    %4 = vector.broadcast %cst : f32 to vector<8x128xf32>
    %c0_5 = arith.constant 0 : index
    %c0_6 = arith.constant 0 : index
    %c0_7 = arith.constant 0 : index
    %c0_8 = arith.constant 0 : index
    %5 = vector.load %arg4[%c0_5, %c0_6, %c0_7, %c0_8] : memref<1x4x8x128xbf16, #tpu.memory_space<vmem>>, vector<1x1x8x128xbf16>
    %6 = vector.shape_cast %5 : vector<1x1x8x128xbf16> to vector<8x128xbf16>
    %cst_9 = arith.constant dense<0.000000e+00> : vector<8x128xf32>
    %7 = tpu.matmul %1, %6, %cst_9 {dimension_numbers = #tpu.dot_dimension_numbers<[1], [0], [0], [1], [0, 0, 1, 1], [], []>} : vector<8x8xbf16>, vector<8x128xbf16>, vector<8x128xf32> -> vector<8x128xf32>
    %cst_10 = arith.constant dense<0.000000e+00> : vector<8x128xf32>
    %8 = tpu.matmul %3, %6, %cst_10 {dimension_numbers = #tpu.dot_dimension_numbers<[1], [0], [0], [1], [0, 0, 1, 1], [], []>} : vector<8x8xbf16>, vector<8x128xbf16>, vector<8x128xf32> -> vector<8x128xf32>
    %9 = arith.mulf %7, %8 : vector<8x128xf32>
    %10 = arith.addf %4, %9 : vector<8x128xf32>
    %c0_11 = arith.constant 0 : index
    %c1 = arith.constant 1 : index
    %c0_12 = arith.constant 0 : index
    %c0_13 = arith.constant 0 : index
    %11 = vector.load %arg4[%c0_11, %c1, %c0_12, %c0_13] : memref<1x4x8x128xbf16, #tpu.memory_space<vmem>>, vector<1x1x8x128xbf16>
    %12 = vector.shape_cast %11 : vector<1x1x8x128xbf16> to vector<8x128xbf16>
    %cst_14 = arith.constant dense<0.000000e+00> : vector<8x128xf32>
    %13 = tpu.matmul %1, %12, %cst_14 {dimension_numbers = #tpu.dot_dimension_numbers<[1], [0], [0], [1], [0, 0, 1, 1], [], []>} : vector<8x8xbf16>, vector<8x128xbf16>, vector<8x128xf32> -> vector<8x128xf32>
    %cst_15 = arith.constant dense<0.000000e+00> : vector<8x128xf32>
    %14 = tpu.matmul %3, %12, %cst_15 {dimension_numbers = #tpu.dot_dimension_numbers<[1], [0], [0], [1], [0, 0, 1, 1], [], []>} : vector<8x8xbf16>, vector<8x128xbf16>, vector<8x128xf32> -> vector<8x128xf32>
    %15 = arith.mulf %13, %14 : vector<8x128xf32>
    %16 = arith.addf %10, %15 : vector<8x128xf32>
    %c0_16 = arith.constant 0 : index
    %c2 = arith.constant 2 : index
    %c0_17 = arith.constant 0 : index
    %c0_18 = arith.constant 0 : index
    %17 = vector.load %arg4[%c0_16, %c2, %c0_17, %c0_18] : memref<1x4x8x128xbf16, #tpu.memory_space<vmem>>, vector<1x1x8x128xbf16>
    %18 = vector.shape_cast %17 : vector<1x1x8x128xbf16> to vector<8x128xbf16>
    %cst_19 = arith.constant dense<0.000000e+00> : vector<8x128xf32>
    %19 = tpu.matmul %1, %18, %cst_19 {dimension_numbers = #tpu.dot_dimension_numbers<[1], [0], [0], [1], [0, 0, 1, 1], [], []>} : vector<8x8xbf16>, vector<8x128xbf16>, vector<8x128xf32> -> vector<8x128xf32>
    %cst_20 = arith.constant dense<0.000000e+00> : vector<8x128xf32>
    %20 = tpu.matmul %3, %18, %cst_20 {dimension_numbers = #tpu.dot_dimension_numbers<[1], [0], [0], [1], [0, 0, 1, 1], [], []>} : vector<8x8xbf16>, vector<8x128xbf16>, vector<8x128xf32> -> vector<8x128xf32>
    %21 = arith.mulf %19, %20 : vector<8x128xf32>
    %22 = arith.addf %16, %21 : vector<8x128xf32>
    %c0_21 = arith.constant 0 : index
    %c3 = arith.constant 3 : index
    %c0_22 = arith.constant 0 : index
    %c0_23 = arith.constant 0 : index
    %23 = vector.load %arg4[%c0_21, %c3, %c0_22, %c0_23] : memref<1x4x8x128xbf16, #tpu.memory_space<vmem>>, vector<1x1x8x128xbf16>
    %24 = vector.shape_cast %23 : vector<1x1x8x128xbf16> to vector<8x128xbf16>
    %cst_24 = arith.constant dense<0.000000e+00> : vector<8x128xf32>
    %25 = tpu.matmul %1, %24, %cst_24 {dimension_numbers = #tpu.dot_dimension_numbers<[1], [0], [0], [1], [0, 0, 1, 1], [], []>} : vector<8x8xbf16>, vector<8x128xbf16>, vector<8x128xf32> -> vector<8x128xf32>
    %cst_25 = arith.constant dense<0.000000e+00> : vector<8x128xf32>
    %26 = tpu.matmul %3, %24, %cst_25 {dimension_numbers = #tpu.dot_dimension_numbers<[1], [0], [0], [1], [0, 0, 1, 1], [], []>} : vector<8x8xbf16>, vector<8x128xbf16>, vector<8x128xf32> -> vector<8x128xf32>
    %27 = arith.mulf %25, %26 : vector<8x128xf32>
    %28 = arith.addf %22, %27 : vector<8x128xf32>
    %cst_26 = arith.constant 2.500000e-01 : f32
    %29 = vector.broadcast %cst_26 : f32 to vector<8x128xf32>
    %30 = arith.mulf %28, %29 : vector<8x128xf32>
    %cst_27 = arith.constant dense<0.000000e+00> : vector<8xf32>
    %31 = vector.multi_reduction <add>, %30, %cst_27 [1] : vector<8x128xf32> to vector<8xf32>
    %32 = vector.shape_cast %31 : vector<8xf32> to vector<8x1xf32>
    %cst_28 = arith.constant 9.99999974E-6 : f32
    %33 = vector.broadcast %cst_28 : f32 to vector<8x1xf32>
    %34 = arith.addf %32, %33 : vector<8x1xf32>
    %35 = tpu.reciprocal %34 {approx = true} : vector<8x1xf32> -> vector<8x1xf32>
    %36 = vector.broadcast %35 : vector<8x1xf32> to vector<8x128xf32>
    %37 = arith.mulf %30, %36 : vector<8x128xf32>
    %38 = arith.truncf %37 : vector<8x128xf32> to vector<8x128xbf16>
    %c0_29 = arith.constant 0 : index
    %c0_30 = arith.constant 0 : index
    %c0_31 = arith.constant 0 : index
    %39 = vector.load %arg5[%c0_29, %c0_30, %c0_31] : memref<1x128x128xbf16, #tpu.memory_space<vmem>>, vector<1x128x128xbf16>
    %40 = vector.shape_cast %39 : vector<1x128x128xbf16> to vector<128x128xbf16>
    %cst_32 = arith.constant dense<0.000000e+00> : vector<8x128xf32>
    %41 = tpu.matmul %38, %40, %cst_32 {dimension_numbers = #tpu.dot_dimension_numbers<[1], [0], [0], [1], [0, 0, 1, 1], [], []>} : vector<8x128xbf16>, vector<128x128xbf16>, vector<8x128xf32> -> vector<8x128xf32>
    %42 = arith.truncf %41 : vector<8x128xf32> to vector<8x128xbf16>
    %c0_33 = arith.constant 0 : index
    %c0_34 = arith.constant 0 : index
    %c0_35 = arith.constant 0 : index
    %43 = vector.load %arg6[%c0_33, %c0_34, %c0_35] : memref<1x8x128xbf16, #tpu.memory_space<vmem>>, vector<1x8x128xbf16>
    %44 = vector.shape_cast %43 : vector<1x8x128xbf16> to vector<8x128xbf16>
    %45 = vector.shape_cast %42 : vector<8x128xbf16> to vector<1x8x128xbf16>
    tpu.vector_store %arg6[%c0_33, %c0_34, %c0_35], %45 {strides = array<i32>} : memref<1x8x128xbf16, #tpu.memory_space<vmem>>, vector<1x8x128xbf16>,
    return
  }
  func.func @transform_0(%arg0: i32, %arg1: i32) -> (i32, i32, i32) {
    %c0_i32 = arith.constant 0 : i32
    %c0_i32_0 = arith.constant 0 : i32
    return %arg0, %arg1, %c0_i32 : i32, i32, i32
  }
  func.func @transform_1(%arg0: i32, %arg1: i32) -> (i32, i32, i32) {
    %c0_i32 = arith.constant 0 : i32
    %c0_i32_0 = arith.constant 0 : i32
    return %arg0, %arg1, %c0_i32 : i32, i32, i32
  }
  func.func @transform_2(%arg0: i32, %arg1: i32) -> (i32, i32, i32, i32) {
    %c0_i32 = arith.constant 0 : i32
    %c0_i32_0 = arith.constant 0 : i32
    %c0_i32_1 = arith.constant 0 : i32
    %c0_i32_2 = arith.constant 0 : i32
    return %arg0, %c0_i32, %c0_i32_0, %c0_i32_1 : i32, i32, i32, i32
  }
  func.func @transform_3(%arg0: i32, %arg1: i32) -> (i32, i32, i32) {
    %c0_i32 = arith.constant 0 : i32
    %c0_i32_0 = arith.constant 0 : i32
    %c0_i32_1 = arith.constant 0 : i32
    return %arg0, %c0_i32, %c0_i32_0 : i32, i32, i32
  }
  func.func @transform_4(%arg0: i32, %arg1: i32) -> (i32, i32, i32) {
    %c0_i32 = arith.constant 0 : i32
    %c0_i32_0 = arith.constant 0 : i32
    return %arg0, %arg1, %c0_i32 : i32, i32, i32
  }
}

</mosaic_0001>

<llo_original>
// kernel: tpu_custom_call.1
$region0: #{tpu_custom_call.1}
  #allocation0 [shape = 'u32[]', space=smem, size = 0x4, offset = 0x4, fixed_abs, tag = 'smem constant byte address 0x4 - core index']
  #allocation1 [shape = 'u32[144,128]{1,0:T(1,128)}', space=vmem, size = 0x12000, scoped, tag = 'internal scratch']
  %s0 = inlined_call_operand.hbm [shape: bf16[2,8,8], index: 0, kind: input, shape index: {}]
  %s1 = inlined_call_operand.hbm [shape: bf16[2,8,8], index: 1, kind: input, shape index: {}]
  %s2 = inlined_call_operand.hbm [shape: bf16[2,4,8,128], index: 2, kind: input, shape index: {}]
  %s3 = inlined_call_operand.hbm [shape: bf16[2,128,128], index: 3, kind: input, shape index: {}]
  %s4 = inlined_call_operand.hbm [shape: bf16[2,8,128], index: 4, kind: output, shape index: {}]
  %s5 = sld [smem:[#allocation0]]
  $region65: #{tpu_custom_call.1} parent=0
    _
  %s7 = ssub.s32 1, %s5
  %s8 = scalar_select 0, %s7, %s5
  $region1: #{tpu_custom_call.1} parent=0
    #allocation2 [shape = 'u8[4096]{0}', space=vmem, size = 0x1000, scoped, tag = 'input window, operand 0']
    #allocation3 [shape = 's32[2]{0}', space=sflag, size = 0x8, scoped, tag = 'scoped memory for tpu_custom_call.1']
    #allocation4 [shape = 's32[2]{0}', space=sflag, size = 0x8, scoped, tag = 'scoped memory for tpu_custom_call.1']
    #allocation5 [shape = 'u8[4096]{0}', space=vmem, size = 0x1000, scoped, tag = 'input window, operand 1']
    #allocation6 [shape = 's32[2]{0}', space=sflag, size = 0x8, scoped, tag = 'scoped memory for tpu_custom_call.1']
    #allocation7 [shape = 'u8[16384]{0}', space=vmem, size = 0x4000, scoped, tag = 'input window, operand 2']
    #allocation8 [shape = 'u8[65536]{0}', space=vmem, size = 0x10000, scoped, tag = 'input window, operand 3']
    #allocation9 [shape = 's32[2]{0}', space=sflag, size = 0x8, scoped, tag = 'scoped memory for tpu_custom_call.1']
    #allocation10 [shape = 'u8[4096]{0}', space=vmem, size = 0x1000, scoped, tag = 'output window, operand 0']
    %9 = vsyncpa [#allocation3], 0
    %s10 = scalar_lea.sflag [#allocation3], 1
    %11 = vsyncpa %s10, 0
    %12 = vsyncpa [#allocation6], 0
    %s13 = scalar_lea.sflag [#allocation6], 1
    %14 = vsyncpa %s13, 0
    %15 = vsyncpa [#allocation9], 0
    %s16 = scalar_lea.sflag [#allocation9], 1
    %17 = vsyncpa %s16, 0
    %18 = vsyncpa [#allocation4], 0
    %s19 = scalar_lea.sflag [#allocation4], 1
    %20 = vsyncpa %s19, 0
    loop: start=0, step=1, limit=4
    $region2: #{tpu_custom_call.1} parent=1 // loop_pre_header
      _
    $region3: #{tpu_custom_call.1} parent=1 // loop_header
      %s22 = sphi 0, %s26
      %p23 = scmp.ge.s32.totalorder %s22, 4
      %s29 = sphi 0, %s41
      %s30 = sphi 0, %s37
      %s31 = sphi 0, %s29
      %s32 = sphi 0, %s30
      %s33 = sphi 0, %s31
      %s34 = sphi 0, %s32
      %s46 = sphi 0, %s48
      %s49 = sphi 0, %s46
      %s50 = sphi 0, %s49
      %s66 = sphi 0, %s50
      %s74 = sphi 0, %s76
      %s77 = sphi 0, %s74
      %s78 = sphi 0, %s77
      %s94 = sphi 0, %s78
      %s100 = sphi 0, %s102
      %s103 = sphi 0, %s100
      %s104 = sphi 0, %s103
      %s120 = sphi 0, %s104
      %s126 = sphi 0, %s128
      %s129 = sphi 0, %s126
      %s130 = sphi 0, %s129
      %s146 = sphi 0, %s130
      %s154 = sphi 0, %s156
      %s157 = sphi 0, %s154
      %s158 = sphi 0, %s157
      %s174 = sphi 0, %s158
    $region4: #{tpu_custom_call.1} parent=1 // loop_header_branch
      %25 = sbr.rel (%p23) target = $region8
    $region5: #{tpu_custom_call.1} parent=1 // loop_body
      %s27 = ssub.s32 %s22, 1
      %s28 = ssub.s32 %s22, 2
      %s35 = sadd.s32 1, %s30
      %p36 = scmp.ge.s32.totalorder %s35, 1
      %s37 = scalar_select %p36, 0, %s35
      %s38 = sadd.s32 1, %s29
      %s39 = scalar_select %p36, %s38, %s29
      %p40 = scmp.ge.s32.totalorder %s39, 2
      %s41 = scalar_select %p40, 0, %s39
      %s42 = ssub.s32 %s29, %s41
      %s43 = ssub.s32 %s30, %s37
      %s44 = sor.u32 %s42, %s43
      %p45 = scmp.eq.s32.totalorder %s44, 0
      %s47 = sadd.s32 %s46, 1
      %s48 = scalar_select %p45, %s46, %s47
      %p51 = pneg %p45
      %p52 = scmp.eq.s32.totalorder %s22, 1
      %p53 = por %p51, %p52
      %p54 = scmp.ne.s32.totalorder %s46, %s49
      %p55 = scmp.eq.s32.totalorder %s22, 0
      %p56 = por %p54, %p55
      %p57 = scmp.ne.s32.totalorder %s46, %s49
      %p58 = scmp.eq.s32.totalorder %s27, 1
      %p59 = por %p57, %p58
      %p60 = scmp.ne.s32.totalorder %s49, %s50
      %p61 = scmp.eq.s32.totalorder %s27, 0
      %p62 = por %p60, %p61
      %p63 = scmp.ne.s32.totalorder %s49, %s50
      %p64 = scmp.eq.s32.totalorder %s28, 1
      %p65 = por %p63, %p64
      %p67 = scmp.ne.s32.totalorder %s50, %s66
      %p68 = scmp.eq.s32.totalorder %s28, 0
      %p69 = por %p67, %p68
      %s70 = ssub.s32 %s29, %s41
      %s71 = ssub.s32 %s30, %s37
      %s72 = sor.u32 %s70, %s71
      %p73 = scmp.eq.s32.totalorder %s72, 0
      %s75 = sadd.s32 %s74, 1
      %s76 = scalar_select %p73, %s74, %s75
      %p79 = pneg %p73
      %p80 = scmp.eq.s32.totalorder %s22, 1
      %p81 = por %p79, %p80
      %p82 = scmp.ne.s32.totalorder %s74, %s77
      %p83 = scmp.eq.s32.totalorder %s22, 0
      %p84 = por %p82, %p83
      %p85 = scmp.ne.s32.totalorder %s74, %s77
      %p86 = scmp.eq.s32.totalorder %s27, 1
      %p87 = por %p85, %p86
      %p88 = scmp.ne.s32.totalorder %s77, %s78
      %p89 = scmp.eq.s32.totalorder %s27, 0
      %p90 = por %p88, %p89
      %p91 = scmp.ne.s32.totalorder %s77, %s78
      %p92 = scmp.eq.s32.totalorder %s28, 1
      %p93 = por %p91, %p92
      %p95 = scmp.ne.s32.totalorder %s78, %s94
      %p96 = scmp.eq.s32.totalorder %s28, 0
      %p97 = por %p95, %p96
      %s98 = ssub.s32 %s29, %s41
      %p99 = scmp.eq.s32.totalorder %s98, 0
      %s101 = sadd.s32 %s100, 1
      %s102 = scalar_select %p99, %s100, %s101
      %p105 = pneg %p99
      %p106 = scmp.eq.s32.totalorder %s22, 1
      %p107 = por %p105, %p106
      %p108 = scmp.ne.s32.totalorder %s100, %s103
      %p109 = scmp.eq.s32.totalorder %s22, 0
      %p110 = por %p108, %p109
      %p111 = scmp.ne.s32.totalorder %s100, %s103
      %p112 = scmp.eq.s32.totalorder %s27, 1
      %p113 = por %p111, %p112
      %p114 = scmp.ne.s32.totalorder %s103, %s104
      %p115 = scmp.eq.s32.totalorder %s27, 0
      %p116 = por %p114, %p115
      %p117 = scmp.ne.s32.totalorder %s103, %s104
      %p118 = scmp.eq.s32.totalorder %s28, 1
      %p119 = por %p117, %p118
      %p121 = scmp.ne.s32.totalorder %s104, %s120
      %p122 = scmp.eq.s32.totalorder %s28, 0
      %p123 = por %p121, %p122
      %s124 = ssub.s32 %s29, %s41
      %p125 = scmp.eq.s32.totalorder %s124, 0
      %s127 = sadd.s32 %s126, 1
      %s128 = scalar_select %p125, %s126, %s127
      %p131 = pneg %p125
      %p132 = scmp.eq.s32.totalorder %s22, 1
      %p133 = por %p131, %p132
      %p134 = scmp.ne.s32.totalorder %s126, %s129
      %p135 = scmp.eq.s32.totalorder %s22, 0
      %p136 = por %p134, %p135
      %p137 = scmp.ne.s32.totalorder %s126, %s129
      %p138 = scmp.eq.s32.totalorder %s27, 1
      %p139 = por %p137, %p138
      %p140 = scmp.ne.s32.totalorder %s129, %s130
      %p141 = scmp.eq.s32.totalorder %s27, 0
      %p142 = por %p140, %p141
      %p143 = scmp.ne.s32.totalorder %s129, %s130
      %p144 = scmp.eq.s32.totalorder %s28, 1
      %p145 = por %p143, %p144
      %p147 = scmp.ne.s32.totalorder %s130, %s146
      %p148 = scmp.eq.s32.totalorder %s28, 0
      %p149 = por %p147, %p148
      %s150 = ssub.s32 %s29, %s41
      %s151 = ssub.s32 %s30, %s37
      %s152 = sor.u32 %s150, %s151
      %p153 = scmp.eq.s32.totalorder %s152, 0
      %s155 = sadd.s32 %s154, 1
      %s156 = scalar_select %p153, %s154, %s155
      %p159 = pneg %p153
      %p160 = scmp.eq.s32.totalorder %s22, 1
      %p161 = por %p159, %p160
      %p162 = scmp.ne.s32.totalorder %s154, %s157
      %p163 = scmp.eq.s32.totalorder %s22, 0
      %p164 = por %p162, %p163
      %p165 = scmp.ne.s32.totalorder %s154, %s157
      %p166 = scmp.eq.s32.totalorder %s27, 1
      %p167 = por %p165, %p166
      %p168 = scmp.ne.s32.totalorder %s157, %s158
      %p169 = scmp.eq.s32.totalorder %s27, 0
      %p170 = por %p168, %p169
      %p171 = scmp.ne.s32.totalorder %s157, %s158
      %p172 = scmp.eq.s32.totalorder %s28, 1
      %p173 = por %p171, %p172
      %p175 = scmp.ne.s32.totalorder %s158, %s174
      %p176 = scmp.eq.s32.totalorder %s28, 0
      %p177 = por %p175, %p176
      %p178 = scmp.le.s32.totalorder 1, %s22
      %p179 = scmp.lt.s32.totalorder %s22, 3
      %p180 = pnand %p178, %p179
      %p181 = pneg %p180
      // Predicated region
      $region9: #{tpu_custom_call.1} parent=5 // pred_check
        _
      $region10: #{tpu_custom_call.1} parent=5 // pred_check_branch
        %183 = sbr.rel (%p180) target = $region12
      $region11: #{tpu_custom_call.1} parent=5 // pred_region
        %s184 = ssub.s32 %s22, 1
      $region12: #{tpu_custom_call.1} parent=5 // pred_fallthru
        _
      %p185 = scmp.lt.s32.totalorder %s22, 2
      // Predicated region
      $region13: #{tpu_custom_call.1} parent=5 // pred_check
        %p186 = pneg %p185
      $region14: #{tpu_custom_call.1} parent=5 // pred_check_branch
        %188 = sbr.rel (%p186) target = $region16
      $region15: #{tpu_custom_call.1} parent=5 // pred_region
        // Predicated region
        $region17: #{tpu_custom_call.1} parent=15 // pred_check
          %p189 = pneg %p56
        $region18: #{tpu_custom_call.1} parent=15 // pred_check_branch
          %191 = sbr.rel (%p189) target = $region20
        $region19: #{tpu_custom_call.1} parent=15 // pred_region
          %s192 = sand.u32 %s46, 1
          %s193 = scalar_lea.sflag [#allocation3], %s192
          %s194 = sand.u32 %s46, 1
          %s195 = smul.addr %s194, 4
          %s196 = scalar_lea.vmem [#allocation2], %s195
          %s198 = ssub.s32 64, 64
          %199 = vsyncadd %s193, %s198
          %s200 = sadd.s32 %s30, %s29
          %s201 = smul.addr %s200, 64
          %s202 = scalar_lea.hbm %s0, %s201
          %s204 = sshll.u32 %s196, 4
          %s205 = int_to_ptr.vmem [resolvable:$true] %s204
          %207 = dma.hbm_to_vmem [thread:$0]  %s202, 64, %s205, %s193
        $region20: #{tpu_custom_call.1} parent=15 // pred_fallthru
          _
        // Predicated region
        $region21: #{tpu_custom_call.1} parent=15 // pred_check
          %p208 = pneg %p84
        $region22: #{tpu_custom_call.1} parent=15 // pred_check_branch
          %210 = sbr.rel (%p208) target = $region24
        $region23: #{tpu_custom_call.1} parent=15 // pred_region
          %s211 = sand.u32 %s22, 1
          %s212 = scalar_lea.sflag [#allocation6], %s211
          %s213 = sand.u32 %s74, 1
          %s214 = smul.addr %s213, 4
          %s215 = scalar_lea.vmem [#allocation5], %s214
          %s217 = ssub.s32 64, 64
          %218 = vsyncadd %s212, %s217
          %s219 = sadd.s32 %s30, %s29
          %s220 = smul.addr %s219, 64
          %s221 = scalar_lea.hbm %s1, %s220
          %s223 = sshll.u32 %s215, 4
          %s224 = int_to_ptr.vmem [resolvable:$true] %s223
          %226 = dma.hbm_to_vmem [thread:$0]  %s221, 64, %s224, %s212
        $region24: #{tpu_custom_call.1} parent=15 // pred_fallthru
          _
        // Predicated region
        $region25: #{tpu_custom_call.1} parent=15 // pred_check
          %p227 = pneg %p110
        $region26: #{tpu_custom_call.1} parent=15 // pred_check_branch
          %229 = sbr.rel (%p227) target = $region28
        $region27: #{tpu_custom_call.1} parent=15 // pred_region
          %s230 = sand.u32 %s22, 1
          %s231 = scalar_lea.sflag [#allocation6], %s230
          %s232 = sand.u32 %s100, 1
          %s233 = smul.addr %s232, 16
          %s234 = scalar_lea.vmem [#allocation7], %s233
          %s236 = ssub.s32 256, 256
          %237 = vsyncadd %s231, %s236
          %s238 = smul.addr %s29, 4
          %s239 = smul.addr %s238, 64
          %s240 = scalar_lea.hbm %s2, %s239
          %s241 = sshll.u32 %s234, 4
          %s242 = int_to_ptr.vmem [resolvable:$true] %s241
          %247 = dma.hbm_to_vmem [thread:$0]  %s240, 256, %s242, %s231, 64, 64, 4
        $region28: #{tpu_custom_call.1} parent=15 // pred_fallthru
          _
        // Predicated region
        $region29: #{tpu_custom_call.1} parent=15 // pred_check
          %p248 = pneg %p136
        $region30: #{tpu_custom_call.1} parent=15 // pred_check_branch
          %250 = sbr.rel (%p248) target = $region32
        $region31: #{tpu_custom_call.1} parent=15 // pred_region
          %s251 = sand.u32 %s126, 1
          %s252 = scalar_lea.sflag [#allocation9], %s251
          %s253 = sand.u32 %s126, 1
          %s254 = smul.addr %s253, 64
          %s255 = scalar_lea.vmem [#allocation8], %s254
          %s257 = ssub.s32 1024, 1024
          %258 = vsyncadd %s252, %s257
          %s259 = smul.addr %s29, 16
          %s260 = smul.addr %s259, 64
          %s261 = scalar_lea.hbm %s3, %s260
          %s262 = sshll.u32 %s255, 4
          %s263 = int_to_ptr.vmem [resolvable:$true] %s262
          %268 = dma.hbm_to_vmem [thread:$0]  %s261, 1024, %s263, %s252, 64, 64, 4
        $region32: #{tpu_custom_call.1} parent=15 // pred_fallthru
          _
      $region16: #{tpu_custom_call.1} parent=5 // pred_fallthru
        _
      %p269 = scmp.le.s32.totalorder 1, %s22
      %p270 = scmp.lt.s32.totalorder %s22, 3
      %p271 = pnand %p269, %p270
      %p272 = pneg %p271
      // Predicated region
      $region33: #{tpu_custom_call.1} parent=5 // pred_check
        _
      $region34: #{tpu_custom_call.1} parent=5 // pred_check_branch
        %274 = sbr.rel (%p271) target = $region36
      $region35: #{tpu_custom_call.1} parent=5 // pred_region
        %s275 = ssub.s32 %s22, 1
        %s276 = sand.u32 %s49, 1
        %s277 = scalar_lea.sflag [#allocation3], %s276
        %s278 = sand.u32 %s49, 1
        %s279 = smul.addr %s278, 4
        %s280 = scalar_lea.vmem [#allocation2], %s279
        // Predicated region
        $region37: #{tpu_custom_call.1} parent=35 // pred_check
          %p281 = pneg %p62
        $region38: #{tpu_custom_call.1} parent=35 // pred_check_branch
          %283 = sbr.rel (%p281) target = $region40
        $region39: #{tpu_custom_call.1} parent=35 // pred_region
          %284 = dma.done %s277, 64
        $region40: #{tpu_custom_call.1} parent=35 // pred_fallthru
          _
        %s285 = sand.u32 %s27, 1
        %s286 = scalar_lea.sflag [#allocation6], %s285
        %s287 = sand.u32 %s77, 1
        %s288 = smul.addr %s287, 4
        %s289 = scalar_lea.vmem [#allocation5], %s288
        // Predicated region
        $region41: #{tpu_custom_call.1} parent=35 // pred_check
          %p290 = pneg %p90
        $region42: #{tpu_custom_call.1} parent=35 // pred_check_branch
          %292 = sbr.rel (%p290) target = $region44
        $region43: #{tpu_custom_call.1} parent=35 // pred_region
          %293 = dma.done %s286, 64
        $region44: #{tpu_custom_call.1} parent=35 // pred_fallthru
          _
        %s294 = sand.u32 %s27, 1
        %s295 = scalar_lea.sflag [#allocation6], %s294
        %s296 = sand.u32 %s103, 1
        %s297 = smul.addr %s296, 16
        %s298 = scalar_lea.vmem [#allocation7], %s297
        // Predicated region
        $region45: #{tpu_custom_call.1} parent=35 // pred_check
          %p299 = pneg %p116
        $region46: #{tpu_custom_call.1} parent=35 // pred_check_branch
          %301 = sbr.rel (%p299) target = $region48
        $region47: #{tpu_custom_call.1} parent=35 // pred_region
          %302 = dma.done %s295, 256
        $region48: #{tpu_custom_call.1} parent=35 // pred_fallthru
          _
        %s303 = sand.u32 %s129, 1
        %s304 = scalar_lea.sflag [#allocation9], %s303
        %s305 = sand.u32 %s129, 1
        %s306 = smul.addr %s305, 64
        %s307 = scalar_lea.vmem [#allocation8], %s306
        // Predicated region
        $region49: #{tpu_custom_call.1} parent=35 // pred_check
          %p308 = pneg %p142
        $region50: #{tpu_custom_call.1} parent=35 // pred_check_branch
          %310 = sbr.rel (%p308) target = $region52
        $region51: #{tpu_custom_call.1} parent=35 // pred_region
          %311 = dma.done %s304, 1024
        $region52: #{tpu_custom_call.1} parent=35 // pred_fallthru
          _
        %s312 = sand.u32 %s49, 1
        %s313 = scalar_lea.sflag [#allocation3], %s312
        %s314 = sand.u32 %s49, 1
        %s315 = smul.addr %s314, 4
        %s316 = scalar_lea.vmem [#allocation2], %s315
        %p317 = pneg %p62
        %p318 = pneg %p59
        %s319 = sand.u32 %s27, 1
        %s320 = scalar_lea.sflag [#allocation6], %s319
        %s321 = sand.u32 %s77, 1
        %s322 = smul.addr %s321, 4
        %s323 = scalar_lea.vmem [#allocation5], %s322
        %p324 = pneg %p90
        %p325 = pneg %p87
        %s326 = sand.u32 %s27, 1
        %s327 = scalar_lea.sflag [#allocation6], %s326
        %s328 = sand.u32 %s103, 1
        %s329 = smul.addr %s328, 16
        %s330 = scalar_lea.vmem [#allocation7], %s329
        %p331 = pneg %p116
        %p332 = pneg %p113
        %s333 = sand.u32 %s129, 1
        %s334 = scalar_lea.sflag [#allocation9], %s333
        %s335 = sand.u32 %s129, 1
        %s336 = smul.addr %s335, 64
        %s337 = scalar_lea.vmem [#allocation8], %s336
        %p338 = pneg %p142
        %p339 = pneg %p139
        %p340 = pneg %p170
        %p341 = pneg %p167
        %s342 = sand.u32 %s157, 1
        %s343 = scalar_lea.sflag [#allocation4], %s342
        %s344 = sand.u32 %s157, 1
        %s345 = smul.addr %s344, 4
        %s346 = scalar_lea.vmem [#allocation10], %s345
        %v348 = vld [vmem:[%s280] sm:$0xf]
        %v349 = vld [vmem:[%s289] sm:$0xf]
        %v350 = vld [vmem:[%s298] sm:$0xf]
        %vm351 = vcmask 64512
        %v353 = vsel %vm351, %v348, 0
        %vm355 = vcmask 1043456
        %v357 = vsel %vm355, %v350, 0
        %359 = vmatprep.subr.bf16.mxu0 0
        %360 = vmatpush1.bf16.msra.mxu0 %v357
        %361 = vmatprep.subr.bf16.mxu0 0
        %362 = vmatpush1.bf16.msra.mxu0 0
        %363 = vmatprep.subr.bf16.mxu0 0
        %364 = vmatpush1.bf16.msra.mxu0 0
        %365 = vmatprep.subr.bf16.mxu0 0
        %366 = vmatpush1.bf16.msra.mxu0 0
        %367 = vmatprep.subr.bf16.mxu0 0
        %368 = vmatpush1.bf16.msra.mxu0 0
        %369 = vmatprep.subr.bf16.mxu0 0
        %370 = vmatpush1.bf16.msra.mxu0 0
        %371 = vmatprep.subr.bf16.mxu0 0
        %372 = vmatpush1.bf16.msra.mxu0 0
        %373 = vmatprep.subr.bf16.mxu0 0
        %374 = vmatpush1.bf16.msra.mxu0 0
        %375 = vmatprep.subr.bf16.mxu0 0
        %376 = vmatpush1.bf16.msra.mxu0 0
        %377 = vmatprep.subr.bf16.mxu0 0
        %378 = vmatpush1.bf16.msra.mxu0 0
        %379 = vmatprep.subr.bf16.mxu0 0
        %380 = vmatpush1.bf16.msra.mxu0 0
        %381 = vmatprep.subr.bf16.mxu0 0
        %382 = vmatpush1.bf16.msra.mxu0 0
        %383 = vmatprep.subr.bf16.mxu0 0
        %384 = vmatpush1.bf16.msra.mxu0 0
        %385 = vmatprep.subr.bf16.mxu0 0
        %386 = vmatpush1.bf16.msra.mxu0 0
        %387 = vmatprep.subr.bf16.mxu0 0
        %388 = vmatpush1.bf16.msra.mxu0 0
        %389 = vmatprep.subr.bf16.mxu0 0
        %390 = vmatpush1.bf16.msra.mxu0 0
        %391 = vmatprep.mubr.bf16.mxu0 0
        %392 = vmatmul.mubr.bf16.gmra.mrb[0].mxu0 %v353
        %v393 = vpop.f32.mrb[0].mxu0
        %v394 = vadd.f32 0.0, %v393
        %v395 = vpop.f32.mrb[0].mxu0
        %v396 = vpop.f32.mrb[0].mxu0
        %v397 = vpop.f32.mrb[0].mxu0
        %398 = vdwg.mxu0
        %v400 = vsel %vm351, %v349, 0
        %402 = vmatprep.subr.bf16.mxu0 0
        %403 = vmatpush1.bf16.msra.mxu0 %v357
        %404 = vmatprep.subr.bf16.mxu0 0
        %405 = vmatpush1.bf16.msra.mxu0 0
        %406 = vmatprep.subr.bf16.mxu0 0
        %407 = vmatpush1.bf16.msra.mxu0 0
        %408 = vmatprep.subr.bf16.mxu0 0
        %409 = vmatpush1.bf16.msra.mxu0 0
        %410 = vmatprep.subr.bf16.mxu0 0
        %411 = vmatpush1.bf16.msra.mxu0 0
        %412 = vmatprep.subr.bf16.mxu0 0
        %413 = vmatpush1.bf16.msra.mxu0 0
        %414 = vmatprep.subr.bf16.mxu0 0
        %415 = vmatpush1.bf16.msra.mxu0 0
        %416 = vmatprep.subr.bf16.mxu0 0
        %417 = vmatpush1.bf16.msra.mxu0 0
        %418 = vmatprep.subr.bf16.mxu0 0
        %419 = vmatpush1.bf16.msra.mxu0 0
        %420 = vmatprep.subr.bf16.mxu0 0
        %421 = vmatpush1.bf16.msra.mxu0 0
        %422 = vmatprep.subr.bf16.mxu0 0
        %423 = vmatpush1.bf16.msra.mxu0 0
        %424 = vmatprep.subr.bf16.mxu0 0
        %425 = vmatpush1.bf16.msra.mxu0 0
        %426 = vmatprep.subr.bf16.mxu0 0
        %427 = vmatpush1.bf16.msra.mxu0 0
        %428 = vmatprep.subr.bf16.mxu0 0
        %429 = vmatpush1.bf16.msra.mxu0 0
        %430 = vmatprep.subr.bf16.mxu0 0
        %431 = vmatpush1.bf16.msra.mxu0 0
        %432 = vmatprep.subr.bf16.mxu0 0
        %433 = vmatpush1.bf16.msra.mxu0 0
        %434 = vmatprep.mubr.bf16.mxu0 0
        %435 = vmatmul.mubr.bf16.gmra.mrb[0].mxu0 %v400
        %v436 = vpop.f32.mrb[0].mxu0
        %v437 = vadd.f32 0.0, %v436
        %v438 = vpop.f32.mrb[0].mxu0
        %v439 = vpop.f32.mrb[0].mxu0
        %v440 = vpop.f32.mrb[0].mxu0
        %441 = vdwg.mxu0
        %v442 = vmul.f32 %v394, %v437
        %v443 = vadd.f32 %v442, 0.0
        %s444 = scalar_lea.vmem %s298, 4 [#allocation7]
        %v445 = vld [vmem:[%s444] sm:$0xf]
        %v447 = vsel %vm355, %v445, 0
        %449 = vmatprep.subr.bf16.mxu0 0
        %450 = vmatpush1.bf16.msra.mxu0 %v447
        %451 = vmatprep.subr.bf16.mxu0 0
        %452 = vmatpush1.bf16.msra.mxu0 0
        %453 = vmatprep.subr.bf16.mxu0 0
        %454 = vmatpush1.bf16.msra.mxu0 0
        %455 = vmatprep.subr.bf16.mxu0 0
        %456 = vmatpush1.bf16.msra.mxu0 0
        %457 = vmatprep.subr.bf16.mxu0 0
        %458 = vmatpush1.bf16.msra.mxu0 0
        %459 = vmatprep.subr.bf16.mxu0 0
        %460 = vmatpush1.bf16.msra.mxu0 0
        %461 = vmatprep.subr.bf16.mxu0 0
        %462 = vmatpush1.bf16.msra.mxu0 0
        %463 = vmatprep.subr.bf16.mxu0 0
        %464 = vmatpush1.bf16.msra.mxu0 0
        %465 = vmatprep.subr.bf16.mxu0 0
        %466 = vmatpush1.bf16.msra.mxu0 0
        %467 = vmatprep.subr.bf16.mxu0 0
        %468 = vmatpush1.bf16.msra.mxu0 0
        %469 = vmatprep.subr.bf16.mxu0 0
        %470 = vmatpush1.bf16.msra.mxu0 0
        %471 = vmatprep.subr.bf16.mxu0 0
        %472 = vmatpush1.bf16.msra.mxu0 0
        %473 = vmatprep.subr.bf16.mxu0 0
        %474 = vmatpush1.bf16.msra.mxu0 0
        %475 = vmatprep.subr.bf16.mxu0 0
        %476 = vmatpush1.bf16.msra.mxu0 0
        %477 = vmatprep.subr.bf16.mxu0 0
        %478 = vmatpush1.bf16.msra.mxu0 0
        %479 = vmatprep.subr.bf16.mxu0 0
        %480 = vmatpush1.bf16.msra.mxu0 0
        %481 = vmatprep.mubr.bf16.mxu0 0
        %482 = vmatmul.mubr.bf16.gmra.mrb[0].mxu0 %v353
        %v483 = vpop.f32.mrb[0].mxu0
        %v484 = vadd.f32 0.0, %v483
        %v485 = vpop.f32.mrb[0].mxu0
        %v486 = vpop.f32.mrb[0].mxu0
        %v487 = vpop.f32.mrb[0].mxu0
        %488 = vdwg.mxu0
        %489 = vmatprep.subr.bf16.mxu0 0
        %490 = vmatpush1.bf16.msra.mxu0 %v447
        %491 = vmatprep.subr.bf16.mxu0 0
        %492 = vmatpush1.bf16.msra.mxu0 0
        %493 = vmatprep.subr.bf16.mxu0 0
        %494 = vmatpush1.bf16.msra.mxu0 0
        %495 = vmatprep.subr.bf16.mxu0 0
        %496 = vmatpush1.bf16.msra.mxu0 0
        %497 = vmatprep.subr.bf16.mxu0 0
        %498 = vmatpush1.bf16.msra.mxu0 0
        %499 = vmatprep.subr.bf16.mxu0 0
        %500 = vmatpush1.bf16.msra.mxu0 0
        %501 = vmatprep.subr.bf16.mxu0 0
        %502 = vmatpush1.bf16.msra.mxu0 0
        %503 = vmatprep.subr.bf16.mxu0 0
        %504 = vmatpush1.bf16.msra.mxu0 0
        %505 = vmatprep.subr.bf16.mxu0 0
        %506 = vmatpush1.bf16.msra.mxu0 0
        %507 = vmatprep.subr.bf16.mxu0 0
        %508 = vmatpush1.bf16.msra.mxu0 0
        %509 = vmatprep.subr.bf16.mxu0 0
        %510 = vmatpush1.bf16.msra.mxu0 0
        %511 = vmatprep.subr.bf16.mxu0 0
        %512 = vmatpush1.bf16.msra.mxu0 0
        %513 = vmatprep.subr.bf16.mxu0 0
        %514 = vmatpush1.bf16.msra.mxu0 0
        %515 = vmatprep.subr.bf16.mxu0 0
        %516 = vmatpush1.bf16.msra.mxu0 0
        %517 = vmatprep.subr.bf16.mxu0 0
        %518 = vmatpush1.bf16.msra.mxu0 0
        %519 = vmatprep.subr.bf16.mxu0 0
        %520 = vmatpush1.bf16.msra.mxu0 0
        %521 = vmatprep.mubr.bf16.mxu0 0
        %522 = vmatmul.mubr.bf16.gmra.mrb[0].mxu0 %v400
        %v523 = vpop.f32.mrb[0].mxu0
        %v524 = vadd.f32 0.0, %v523
        %v525 = vpop.f32.mrb[0].mxu0
        %v526 = vpop.f32.mrb[0].mxu0
        %v527 = vpop.f32.mrb[0].mxu0
        %528 = vdwg.mxu0
        %v529 = vmul.f32 %v484, %v524
        %v530 = vadd.f32 %v443, %v529
        %s531 = scalar_lea.vmem %s298, 8 [#allocation7]
        %v532 = vld [vmem:[%s531] sm:$0xf]
        %v534 = vsel %vm355, %v532, 0
        %536 = vmatprep.subr.bf16.mxu0 0
        %537 = vmatpush1.bf16.msra.mxu0 %v534
        %538 = vmatprep.subr.bf16.mxu0 0
        %539 = vmatpush1.bf16.msra.mxu0 0
        %540 = vmatprep.subr.bf16.mxu0 0
        %541 = vmatpush1.bf16.msra.mxu0 0
        %542 = vmatprep.subr.bf16.mxu0 0
        %543 = vmatpush1.bf16.msra.mxu0 0
        %544 = vmatprep.subr.bf16.mxu0 0
        %545 = vmatpush1.bf16.msra.mxu0 0
        %546 = vmatprep.subr.bf16.mxu0 0
        %547 = vmatpush1.bf16.msra.mxu0 0
        %548 = vmatprep.subr.bf16.mxu0 0
        %549 = vmatpush1.bf16.msra.mxu0 0
        %550 = vmatprep.subr.bf16.mxu0 0
        %551 = vmatpush1.bf16.msra.mxu0 0
        %552 = vmatprep.subr.bf16.mxu0 0
        %553 = vmatpush1.bf16.msra.mxu0 0
        %554 = vmatprep.subr.bf16.mxu0 0
        %555 = vmatpush1.bf16.msra.mxu0 0
        %556 = vmatprep.subr.bf16.mxu0 0
        %557 = vmatpush1.bf16.msra.mxu0 0
        %558 = vmatprep.subr.bf16.mxu0 0
        %559 = vmatpush1.bf16.msra.mxu0 0
        %560 = vmatprep.subr.bf16.mxu0 0
        %561 = vmatpush1.bf16.msra.mxu0 0
        %562 = vmatprep.subr.bf16.mxu0 0
        %563 = vmatpush1.bf16.msra.mxu0 0
        %564 = vmatprep.subr.bf16.mxu0 0
        %565 = vmatpush1.bf16.msra.mxu0 0
        %566 = vmatprep.subr.bf16.mxu0 0
        %567 = vmatpush1.bf16.msra.mxu0 0
        %568 = vmatprep.mubr.bf16.mxu0 0
        %569 = vmatmul.mubr.bf16.gmra.mrb[0].mxu0 %v353
        %v570 = vpop.f32.mrb[0].mxu0
        %v571 = vadd.f32 0.0, %v570
        %v572 = vpop.f32.mrb[0].mxu0
        %v573 = vpop.f32.mrb[0].mxu0
        %v574 = vpop.f32.mrb[0].mxu0
        %575 = vdwg.mxu0
        %576 = vmatprep.subr.bf16.mxu0 0
        %577 = vmatpush1.bf16.msra.mxu0 %v534
        %578 = vmatprep.subr.bf16.mxu0 0
        %579 = vmatpush1.bf16.msra.mxu0 0
        %580 = vmatprep.subr.bf16.mxu0 0
        %581 = vmatpush1.bf16.msra.mxu0 0
        %582 = vmatprep.subr.bf16.mxu0 0
        %583 = vmatpush1.bf16.msra.mxu0 0
        %584 = vmatprep.subr.bf16.mxu0 0
        %585 = vmatpush1.bf16.msra.mxu0 0
        %586 = vmatprep.subr.bf16.mxu0 0
        %587 = vmatpush1.bf16.msra.mxu0 0
        %588 = vmatprep.subr.bf16.mxu0 0
        %589 = vmatpush1.bf16.msra.mxu0 0
        %590 = vmatprep.subr.bf16.mxu0 0
        %591 = vmatpush1.bf16.msra.mxu0 0
        %592 = vmatprep.subr.bf16.mxu0 0
        %593 = vmatpush1.bf16.msra.mxu0 0
        %594 = vmatprep.subr.bf16.mxu0 0
        %595 = vmatpush1.bf16.msra.mxu0 0
        %596 = vmatprep.subr.bf16.mxu0 0
        %597 = vmatpush1.bf16.msra.mxu0 0
        %598 = vmatprep.subr.bf16.mxu0 0
        %599 = vmatpush1.bf16.msra.mxu0 0
        %600 = vmatprep.subr.bf16.mxu0 0
        %601 = vmatpush1.bf16.msra.mxu0 0
        %602 = vmatprep.subr.bf16.mxu0 0
        %603 = vmatpush1.bf16.msra.mxu0 0
        %604 = vmatprep.subr.bf16.mxu0 0
        %605 = vmatpush1.bf16.msra.mxu0 0
        %606 = vmatprep.subr.bf16.mxu0 0
        %607 = vmatpush1.bf16.msra.mxu0 0
        %608 = vmatprep.mubr.bf16.mxu0 0
        %609 = vmatmul.mubr.bf16.gmra.mrb[0].mxu0 %v400
        %v610 = vpop.f32.mrb[0].mxu0
        %v611 = vadd.f32 0.0, %v610
        %v612 = vpop.f32.mrb[0].mxu0
        %v613 = vpop.f32.mrb[0].mxu0
        %v614 = vpop.f32.mrb[0].mxu0
        %615 = vdwg.mxu0
        %v616 = vmul.f32 %v571, %v611
        %v617 = vadd.f32 %v530, %v616
        %s618 = scalar_lea.vmem %s298, 12 [#allocation7]
        %v619 = vld [vmem:[%s618] sm:$0xf]
        %v621 = vsel %vm355, %v619, 0
        %623 = vmatprep.subr.bf16.mxu0 0
        %624 = vmatpush1.bf16.msra.mxu0 %v621
        %625 = vmatprep.subr.bf16.mxu0 0
        %626 = vmatpush1.bf16.msra.mxu0 0
        %627 = vmatprep.subr.bf16.mxu0 0
        %628 = vmatpush1.bf16.msra.mxu0 0
        %629 = vmatprep.subr.bf16.mxu0 0
        %630 = vmatpush1.bf16.msra.mxu0 0
        %631 = vmatprep.subr.bf16.mxu0 0
        %632 = vmatpush1.bf16.msra.mxu0 0
        %633 = vmatprep.subr.bf16.mxu0 0
        %634 = vmatpush1.bf16.msra.mxu0 0
        %635 = vmatprep.subr.bf16.mxu0 0
        %636 = vmatpush1.bf16.msra.mxu0 0
        %637 = vmatprep.subr.bf16.mxu0 0
        %638 = vmatpush1.bf16.msra.mxu0 0
        %639 = vmatprep.subr.bf16.mxu0 0
        %640 = vmatpush1.bf16.msra.mxu0 0
        %641 = vmatprep.subr.bf16.mxu0 0
        %642 = vmatpush1.bf16.msra.mxu0 0
        %643 = vmatprep.subr.bf16.mxu0 0
        %644 = vmatpush1.bf16.msra.mxu0 0
        %645 = vmatprep.subr.bf16.mxu0 0
        %646 = vmatpush1.bf16.msra.mxu0 0
        %647 = vmatprep.subr.bf16.mxu0 0
        %648 = vmatpush1.bf16.msra.mxu0 0
        %649 = vmatprep.subr.bf16.mxu0 0
        %650 = vmatpush1.bf16.msra.mxu0 0
        %651 = vmatprep.subr.bf16.mxu0 0
        %652 = vmatpush1.bf16.msra.mxu0 0
        %653 = vmatprep.subr.bf16.mxu0 0
        %654 = vmatpush1.bf16.msra.mxu0 0
        %655 = vmatprep.mubr.bf16.mxu0 0
        %656 = vmatmul.mubr.bf16.gmra.mrb[0].mxu0 %v353
        %v657 = vpop.f32.mrb[0].mxu0
        %v658 = vadd.f32 0.0, %v657
        %v659 = vpop.f32.mrb[0].mxu0
        %v660 = vpop.f32.mrb[0].mxu0
        %v661 = vpop.f32.mrb[0].mxu0
        %662 = vdwg.mxu0
        %663 = vmatprep.subr.bf16.mxu0 0
        %664 = vmatpush1.bf16.msra.mxu0 %v621
        %665 = vmatprep.subr.bf16.mxu0 0
        %666 = vmatpush1.bf16.msra.mxu0 0
        %667 = vmatprep.subr.bf16.mxu0 0
        %668 = vmatpush1.bf16.msra.mxu0 0
        %669 = vmatprep.subr.bf16.mxu0 0
        %670 = vmatpush1.bf16.msra.mxu0 0
        %671 = vmatprep.subr.bf16.mxu0 0
        %672 = vmatpush1.bf16.msra.mxu0 0
        %673 = vmatprep.subr.bf16.mxu0 0
        %674 = vmatpush1.bf16.msra.mxu0 0
        %675 = vmatprep.subr.bf16.mxu0 0
        %676 = vmatpush1.bf16.msra.mxu0 0
        %677 = vmatprep.subr.bf16.mxu0 0
        %678 = vmatpush1.bf16.msra.mxu0 0
        %679 = vmatprep.subr.bf16.mxu0 0
        %680 = vmatpush1.bf16.msra.mxu0 0
        %681 = vmatprep.subr.bf16.mxu0 0
        %682 = vmatpush1.bf16.msra.mxu0 0
        %683 = vmatprep.subr.bf16.mxu0 0
        %684 = vmatpush1.bf16.msra.mxu0 0
        %685 = vmatprep.subr.bf16.mxu0 0
        %686 = vmatpush1.bf16.msra.mxu0 0
        %687 = vmatprep.subr.bf16.mxu0 0
        %688 = vmatpush1.bf16.msra.mxu0 0
        %689 = vmatprep.subr.bf16.mxu0 0
        %690 = vmatpush1.bf16.msra.mxu0 0
        %691 = vmatprep.subr.bf16.mxu0 0
        %692 = vmatpush1.bf16.msra.mxu0 0
        %693 = vmatprep.subr.bf16.mxu0 0
        %694 = vmatpush1.bf16.msra.mxu0 0
        %695 = vmatprep.mubr.bf16.mxu0 0
        %696 = vmatmul.mubr.bf16.gmra.mrb[0].mxu0 %v400
        %v697 = vpop.f32.mrb[0].mxu0
        %v698 = vadd.f32 0.0, %v697
        %v699 = vpop.f32.mrb[0].mxu0
        %v700 = vpop.f32.mrb[0].mxu0
        %v701 = vpop.f32.mrb[0].mxu0
        %702 = vdwg.mxu0
        %v703 = vmul.f32 %v658, %v698
        %v704 = vadd.f32 %v617, %v703
        %v705 = vmul.f32 %v704, 0.25
        %706 = vadd.xlane.f32.xlu0 %v705
        %v707 = vpop.xlane.xlu0 %706
        %v708 = vadd.f32 %v707, 1e-05
        %v709 = vrcp.pop %v708
        %v710 = vmul.f32 %v705, %v709
        %v711 = vpack.c.bf16 %v710, %v710
        %v712 = vld [vmem:[%s307] sm:$0xf]
        %v713 = vld [vmem:[%s307 + $0x4] sm:$0xf]
        %v714 = vld [vmem:[%s307 + $0x8] sm:$0xf]
        %v715 = vld [vmem:[%s307 + $0xc] sm:$0xf]
        %v716 = vld [vmem:[%s307 + $0x10] sm:$0xf]
        %v717 = vld [vmem:[%s307 + $0x14] sm:$0xf]
        %v718 = vld [vmem:[%s307 + $0x18] sm:$0xf]
        %v719 = vld [vmem:[%s307 + $0x1c] sm:$0xf]
        %v720 = vld [vmem:[%s307 + $0x20] sm:$0xf]
        %v721 = vld [vmem:[%s307 + $0x24] sm:$0xf]
        %v722 = vld [vmem:[%s307 + $0x28] sm:$0xf]
        %v723 = vld [vmem:[%s307 + $0x2c] sm:$0xf]
        %v724 = vld [vmem:[%s307 + $0x30] sm:$0xf]
        %v725 = vld [vmem:[%s307 + $0x34] sm:$0xf]
        %v726 = vld [vmem:[%s307 + $0x38] sm:$0xf]
        %v727 = vld [vmem:[%s307 + $0x3c] sm:$0xf]
        %v744 = vunpack.c.l.b16 %v712
        %v745 = vunpack.c.l.b16 %v713
        %v746 = vunpack.c.l.b16 %v714
        %v747 = vunpack.c.l.b16 %v715
        %v748 = vunpack.c.l.b16 %v716
        %v749 = vunpack.c.l.b16 %v717
        %v750 = vunpack.c.l.b16 %v718
        %v751 = vunpack.c.l.b16 %v719
        %v752 = vunpack.c.l.b16 %v720
        %v753 = vunpack.c.l.b16 %v721
        %v754 = vunpack.c.l.b16 %v722
        %v755 = vunpack.c.l.b16 %v723
        %v756 = vunpack.c.l.b16 %v724
        %v757 = vunpack.c.l.b16 %v725
        %v758 = vunpack.c.l.b16 %v726
        %v759 = vunpack.c.l.b16 %v727
        %v760 = vpack.c.b16 %v745, %v744
        %v761 = vpack.c.b16 %v747, %v746
        %v762 = vpack.c.b16 %v749, %v748
        %v763 = vpack.c.b16 %v751, %v750
        %v764 = vpack.c.b16 %v753, %v752
        %v765 = vpack.c.b16 %v755, %v754
        %v766 = vpack.c.b16 %v757, %v756
        %v767 = vpack.c.b16 %v759, %v758
        %776 = vmatprep.subr.bf16.mxu0 0
        %777 = vmatpush1.bf16.msra.mxu0 %v760
        %778 = vmatprep.subr.bf16.mxu0 0
        %779 = vmatpush1.bf16.msra.mxu0 %v761
        %780 = vmatprep.subr.bf16.mxu0 0
        %781 = vmatpush1.bf16.msra.mxu0 %v762
        %782 = vmatprep.subr.bf16.mxu0 0
        %783 = vmatpush1.bf16.msra.mxu0 %v763
        %784 = vmatprep.subr.bf16.mxu0 0
        %785 = vmatpush1.bf16.msra.mxu0 %v764
        %786 = vmatprep.subr.bf16.mxu0 0
        %787 = vmatpush1.bf16.msra.mxu0 %v765
        %788 = vmatprep.subr.bf16.mxu0 0
        %789 = vmatpush1.bf16.msra.mxu0 %v766
        %790 = vmatprep.subr.bf16.mxu0 0
        %791 = vmatpush1.bf16.msra.mxu0 %v767
        %792 = vmatprep.subr.bf16.mxu0 0
        %793 = vmatpush1.bf16.msra.mxu0 0
        %794 = vmatprep.subr.bf16.mxu0 0
        %795 = vmatpush1.bf16.msra.mxu0 0
        %796 = vmatprep.subr.bf16.mxu0 0
        %797 = vmatpush1.bf16.msra.mxu0 0
        %798 = vmatprep.subr.bf16.mxu0 0
        %799 = vmatpush1.bf16.msra.mxu0 0
        %800 = vmatprep.subr.bf16.mxu0 0
        %801 = vmatpush1.bf16.msra.mxu0 0
        %802 = vmatprep.subr.bf16.mxu0 0
        %803 = vmatpush1.bf16.msra.mxu0 0
        %804 = vmatprep.subr.bf16.mxu0 0
        %805 = vmatpush1.bf16.msra.mxu0 0
        %806 = vmatprep.subr.bf16.mxu0 0
        %807 = vmatpush1.bf16.msra.mxu0 0
        %808 = vmatprep.mubr.bf16.mxu0 0
        %809 = vmatmul.mubr.bf16.gmra.mrb[0].mxu0 %v711
        %v810 = vpop.f32.mrb[0].mxu0
        %v811 = vadd.f32 0.0, %v810
        %v812 = vpop.f32.mrb[0].mxu0
        %v813 = vpop.f32.mrb[0].mxu0
        %v814 = vpop.f32.mrb[0].mxu0
        %815 = vdwg.mxu0
        %v816 = vpack.c.bf16 %v811, %v811
        %817 = vst [vmem:[%s346] sm:$0xf] %v816
        %s818 = sand.u32 %s157, 1
        %s819 = scalar_lea.sflag [#allocation4], %s818
        %s820 = sand.u32 %s157, 1
        %s821 = smul.addr %s820, 4
        %s822 = scalar_lea.vmem [#allocation10], %s821
        // Predicated region
        $region53: #{tpu_custom_call.1} parent=35 // pred_check
          %p823 = pneg %p167
        $region54: #{tpu_custom_call.1} parent=35 // pred_check_branch
          %825 = sbr.rel (%p823) target = $region56
        $region55: #{tpu_custom_call.1} parent=35 // pred_region
          %s827 = ssub.s32 64, 64
          %828 = vsyncadd %s819, %s827
          %s829 = sadd.s32 %s32, %s31
          %s830 = smul.addr %s829, 64
          %s831 = scalar_lea.hbm %s4, %s830
          %s833 = sshll.u32 %s822, 4
          %s834 = int_to_ptr.vmem [resolvable:$true] %s833
          %836 = dma.vmem_to_hbm [thread:$0]  %s834, 64, %s831, %s819
        $region56: #{tpu_custom_call.1} parent=35 // pred_fallthru
          _
      $region36: #{tpu_custom_call.1} parent=5 // pred_fallthru
        _
      %p837 = scmp.le.s32.totalorder 2, %s22
      // Predicated region
      $region57: #{tpu_custom_call.1} parent=5 // pred_check
        %p838 = pneg %p837
      $region58: #{tpu_custom_call.1} parent=5 // pred_check_branch
        %840 = sbr.rel (%p838) target = $region60
      $region59: #{tpu_custom_call.1} parent=5 // pred_region
        %s841 = ssub.s32 %s22, 2
        // Predicated region
        $region61: #{tpu_custom_call.1} parent=59 // pred_check
          %p842 = pneg %p173
        $region62: #{tpu_custom_call.1} parent=59 // pred_check_branch
          %844 = sbr.rel (%p842) target = $region64
        $region63: #{tpu_custom_call.1} parent=59 // pred_region
          %s845 = sand.u32 %s158, 1
          %s846 = scalar_lea.sflag [#allocation4], %s845
          %s847 = sand.u32 %s158, 1
          %s848 = smul.addr %s847, 4
          %s849 = scalar_lea.vmem [#allocation10], %s848
          %850 = dma.done %s846, 64
        $region64: #{tpu_custom_call.1} parent=59 // pred_fallthru
          _
      $region60: #{tpu_custom_call.1} parent=5 // pred_fallthru
        _
    $region6: #{tpu_custom_call.1} parent=1 // loop_footer
      %s26 = sadd.s32 1, %s22
    $region7: #{tpu_custom_call.1} parent=1 // loop_footer_branch
      %21 = sbr.rel target = $region3
    $region8: #{tpu_custom_call.1} parent=1 // loop_exit
      _
    %851 = vsyncpa [#allocation3], 1
    %s852 = scalar_lea.sflag [#allocation3], 1
    %853 = vsyncpa %s852, 1
    %854 = vsyncpa [#allocation6], 1
    %s855 = scalar_lea.sflag [#allocation6], 1
    %856 = vsyncpa %s855, 1
    %857 = vsyncpa [#allocation9], 1
    %s858 = scalar_lea.sflag [#allocation9], 1
    %859 = vsyncpa %s858, 1
    %860 = vsyncpa [#allocation4], 1
    %s861 = scalar_lea.sflag [#allocation4], 1
    %862 = vsyncpa %s861, 1

</llo_original>
